<compile_context>
chip_gen: v5e
topology: v5e:2x2
jax: 0.10.0
libtpu: 0.0.40
codegen_flags: <defaults>
</compile_context>

<pallas_src>
import functools

import jax
import jax.numpy as jnp
from jax.experimental import pallas as pl
from jax.experimental.pallas import tpu as pltpu

_LANES = 128
_SMALL_BYTES = 512 << 10        # below this: a single block (per-step overhead > benefit)
_MIN_BLOCKS = 4                 # when splitting, aim for >= 4 blocks (v7x megacore sharding)
_VMEM_LIMIT_BYTES = 40 << 20    # lift scoped VMEM so the large blocks double-buffer cleanly
_DOUBLING_THRESHOLD = 8         # linear recurrence up to this order, doubling above


def _target_block_bytes():
    """Generation-aware block size: bigger blocks on higher-BW chips."""
    try:
        kind = jax.devices()[0].device_kind.lower()
    except Exception:
        kind = ""
    if "v7" in kind or "7x" in kind:
        return 8 << 20
    if "v6" in kind:
        return 4 << 20
    return 2 << 20  # v5e / older / unknown


def _cheb_poly(x, order):
    """T_order(x), statically unrolled. Equals BOTH reference branches exactly."""
    if order == 0:
        return jnp.ones_like(x)
    if order == 1:
        return x
    if order <= _DOUBLING_THRESHOLD:
        # Linear three-term recurrence: 1 mul + 1 sub per step.
        t_prev = jnp.ones_like(x)   # T_{k-1}
        t_cur = x                   # T_k
        two_x = 2.0 * x
        for _ in range(order - 1):
            t_prev, t_cur = t_cur, two_x * t_cur - t_prev
        return t_cur

    # Doubling identities: O(log order) multiplies.
    def pair(n):
        # returns (T_n, T_{n+1})
        if n == 0:
            return jnp.ones_like(x), x
        a, b = pair(n // 2)
        c = 2.0 * a * a - 1.0       # T_{2k}
        d = 2.0 * a * b - x         # T_{2k+1}
        if n % 2 == 0:
            return c, d
        return d, 2.0 * b * b - 1.0  # T_{2k+1}, T_{2k+2}

    return pair(order)[0]


def _chebyshev_kernel(x_ref, o_ref, *, order, inv_alpha):
    # Compute in f32 regardless of I/O dtype.
    x = x_ref[...].astype(jnp.float32) * inv_alpha
    o_ref[...] = _cheb_poly(x, order).astype(o_ref.dtype)


def _run_kernel_2d(x2d, order, inv_alpha):
    """Run the elementwise kernel on a lane-dense (rows, 128) slab."""
    rows = x2d.shape[0]
    dtype = x2d.dtype
    itemsize = jnp.dtype(dtype).itemsize
    align = max(8, 32 // itemsize)          # sublane alignment: 8 f32, 16 bf16, 32 int8/fp8
    total_bytes = rows * _LANES * itemsize

    if total_bytes <= _SMALL_BYTES or rows <= align:
        # Small input: one full-extent block (always layout-legal, no pipeline bookkeeping).
        block_rows = rows
    else:
        # Constant-bytes blocks, but at least _MIN_BLOCKS grid steps for megacore sharding.
        max_rows = max(align, (_target_block_bytes() // (_LANES * itemsize)) // align * align)
        want = -(-rows // _MIN_BLOCKS)          # cdiv(rows, _MIN_BLOCKS)
        want = -(-want // align) * align        # round up to sublane alignment
        block_rows = min(rows, min(max_rows, max(align, want)))

    grid = (pl.cdiv(rows, block_rows),)
    kernel = functools.partial(_chebyshev_kernel, order=order, inv_alpha=inv_alpha)

    return pl.pallas_call(
        kernel,
        out_shape=jax.ShapeDtypeStruct((rows, _LANES), dtype),
        grid_spec=pltpu.PrefetchScalarGridSpec(
            num_scalar_prefetch=0,
            grid=grid,
            in_specs=[pl.BlockSpec((block_rows, _LANES), lambda i: (i, 0))],
            out_specs=pl.BlockSpec((block_rows, _LANES), lambda i: (i, 0)),
        ),
        compiler_params=pltpu.CompilerParams(
            dimension_semantics=("parallel",),
            vmem_limit_bytes=_VMEM_LIMIT_BYTES,
        ),
    )(x2d)


def chebyshev(x, order, alpha=1.0):
    """Applies T_order(x / alpha) elementwise via a Pallas TPU kernel.

    `order` must be a static Python int (unrolled at trace time)."""
    order = int(order)
    inv_alpha = 1.0 / float(alpha)
    orig_shape = x.shape
    dtype = x.dtype

    flat = x.reshape(-1)
    n = flat.shape[0]
    n_main = (n // _LANES) * _LANES

    if n_main == 0:
        # Fewer than 128 elements: plain jnp (same math as the kernel), no pad/slice passes.
        out = _cheb_poly(flat.astype(jnp.float32) * inv_alpha, order).astype(dtype)
        return out.reshape(orig_shape)

    main = flat[:n_main].reshape(n_main // _LANES, _LANES)
    out_main = _run_kernel_2d(main, order, inv_alpha).reshape(-1)

    if n_main == n:
        return out_main.reshape(orig_shape)

    # Ragged tail (< 128 elements): finish with plain jnp instead of pad + slice
    # (which cost two extra full-tensor HBM passes).
    tail = flat[n_main:]
    out_tail = _cheb_poly(tail.astype(jnp.float32) * inv_alpha, order).astype(dtype)
    return jnp.concatenate([out_main, out_tail]).reshape(orig_shape)


def _chebyshev_ref(x, order, alpha=1.0):
    """Pure-JAX reference mirroring the PyTorch forward (clamped-acos / pow branches)."""
    x_val = x / alpha
    eps = 1e-7
    within = jnp.abs(x_val) <= 1.0
    x_clamped = jnp.clip(x_val, -1.0 + eps, 1.0 - eps)
    inside = jnp.cos(order * jnp.arccos(x_clamped))
    s = jnp.sqrt(jnp.maximum(x_val * x_val - 1.0, 0.0))
    outside = 0.5 * ((x_val + s) ** order + (x_val - s) ** order)
    return jnp.where(within, inside, outside)


if __name__ == "__main__":
    key = jax.random.PRNGKey(0)
    # Small NCHW input; values spread across both |x|<=1 and |x|>1 regimes.
    x = jax.random.uniform(
        key, (2, 4, 16, 16), dtype=jnp.float32, minval=-2.0, maxval=2.0
    )

    # Case 1: order=3, alpha=1.0 (values hit both branches).
    out = chebyshev(x, order=3, alpha=1.0)
    out = jax.block_until_ready(out)
    ref = _chebyshev_ref(x, 3, 1.0)
    assert out.shape == x.shape and out.dtype == x.dtype
    assert jnp.allclose(out, ref, atol=1e-5, rtol=1e-5), "mismatch vs reference (order=3)"

    # Case 2: order=5, alpha=2.0 (exercises the scaling path, mostly inside branch).
    out2 = chebyshev(x, order=5, alpha=2.0)
    out2 = jax.block_until_ready(out2)
    ref2 = _chebyshev_ref(x, 5, 2.0)
    assert jnp.allclose(out2, ref2, atol=1e-5, rtol=1e-5), "mismatch vs reference (order=5)"

    # Case 3: order=20 (exercises the O(log order) doubling path).
    out3 = chebyshev(x, order=20, alpha=2.0)
    out3 = jax.block_until_ready(out3)
    ref3 = _chebyshev_ref(x, 20, 2.0)
    assert jnp.allclose(out3, ref3, atol=1e-3, rtol=1e-3), "mismatch vs reference (order=20)"

    # Case 4: ragged size (n % 128 != 0) exercising the prefix-kernel + jnp-tail path.
    key2 = jax.random.PRNGKey(1)
    x4 = jax.random.uniform(key2, (3, 70), dtype=jnp.float32, minval=-2.0, maxval=2.0)
    out4 = chebyshev(x4, order=4, alpha=1.0)
    out4 = jax.block_until_ready(out4)
    ref4 = _chebyshev_ref(x4, 4, 1.0)
    assert out4.shape == x4.shape
    assert jnp.allclose(out4, ref4, atol=1e-5, rtol=1e-5), "mismatch vs reference (ragged)"

    print("KERNEL_OK")
</pallas_src>

<mosaic_0001>
module attributes {stable_mosaic.version = 11 : i64} {
  func.func @_chebyshev_kernel(%arg0: i32, %arg1: memref<16x128xf32, #tpu.memory_space<vmem>>, %arg2: memref<16x128xf32, #tpu.memory_space<vmem>>) attributes {dimension_semantics = [#tpu.dimension_semantics<parallel>], iteration_bounds = array<i64: 1>, scalar_prefetch = 0 : i64, scratch_operands = 0 : i64, tpu.core_type = #tpu.core_type<tc>, window_params = [{transform_indices = @transform_0, window_bounds = array<i64: 16, 128>}, {transform_indices = @transform_1, window_bounds = array<i64: 16, 128>}]} {
    %c0 = arith.constant 0 : index
    %c0_0 = arith.constant 0 : index
    %0 = vector.load %arg1[%c0, %c0_0] : memref<16x128xf32, #tpu.memory_space<vmem>>, vector<16x128xf32>
    %cst = arith.constant 1.000000e+00 : f32
    %1 = vector.broadcast %cst : f32 to vector<16x128xf32>
    %2 = arith.mulf %0, %1 : vector<16x128xf32>
    %cst_1 = arith.constant 1.000000e+00 : f32
    %3 = vector.broadcast %cst_1 : f32 to vector<16x128xf32>
    %cst_2 = arith.constant 2.000000e+00 : f32
    %4 = vector.broadcast %cst_2 : f32 to vector<16x128xf32>
    %5 = arith.mulf %4, %2 : vector<16x128xf32>
    %6 = arith.mulf %5, %2 : vector<16x128xf32>
    %7 = arith.subf %6, %3 : vector<16x128xf32>
    %8 = arith.mulf %5, %7 : vector<16x128xf32>
    %9 = arith.subf %8, %2 : vector<16x128xf32>
    %c0_3 = arith.constant 0 : index
    %c0_4 = arith.constant 0 : index
    %10 = vector.load %arg2[%c0_3, %c0_4] : memref<16x128xf32, #tpu.memory_space<vmem>>, vector<16x128xf32>
    tpu.vector_store %arg2[%c0_3, %c0_4], %9 {strides = array<i32>} : memref<16x128xf32, #tpu.memory_space<vmem>>, vector<16x128xf32>,
    return
  }
  func.func @transform_0(%arg0: i32) -> (i32, i32) {
    %c0_i32 = arith.constant 0 : i32
    %c0_i32_0 = arith.constant 0 : i32
    return %arg0, %c0_i32 : i32, i32
  }
  func.func @transform_1(%arg0: i32) -> (i32, i32) {
    %c0_i32 = arith.constant 0 : i32
    %c0_i32_0 = arith.constant 0 : i32
    return %arg0, %c0_i32 : i32, i32
  }
}

</mosaic_0001>

<llo_original>
// kernel: tpu_custom_call.1
$region0: #{tpu_custom_call.1}
  #allocation0 [shape = 'u32[]', space=smem, size = 0x4, offset = 0x4, fixed_abs, tag = 'smem constant byte address 0x4 - core index']
  #allocation1 [shape = 'u32[72,128]{1,0:T(1,128)}', space=vmem, size = 0x9000, scoped, tag = 'internal scratch']
  %s0 = inlined_call_operand.hbm [shape: f32[16,128], index: 0, kind: input, shape index: {}]
  %s1 = inlined_call_operand.hbm [shape: f32[16,128], index: 1, kind: output, shape index: {}]
  %s2 = sld [smem:[#allocation0]]
  $region18: #{tpu_custom_call.1} parent=0
    _
  %s4 = ssub.s32 1, %s2
  %s5 = scalar_select 0, %s4, %s2
  $region1: #{tpu_custom_call.1} parent=0
    #allocation2 [shape = 'u8[8192]{0}', space=vmem, size = 0x2000, scoped, tag = 'input window, operand 0, single buffered']
    #allocation3 [shape = 's32[1]{0}', space=sflag, size = 0x4, scoped, tag = 'scoped memory for tpu_custom_call.1']
    #allocation4 [shape = 's32[1]{0}', space=sflag, size = 0x4, scoped, tag = 'scoped memory for tpu_custom_call.1']
    #allocation5 [shape = 'u8[8192]{0}', space=vmem, size = 0x2000, scoped, tag = 'output window, operand 0, single buffered']
    %6 = vsyncpa [#allocation3], 0
    %7 = vsyncpa [#allocation4], 0
    // Predicated region
    $region2: #{tpu_custom_call.1} parent=1 // pred_check
      _
    $region3: #{tpu_custom_call.1} parent=1 // pred_check_branch
      %9 = sbr.rel (0) target = $region5
    $region4: #{tpu_custom_call.1} parent=1 // pred_region
      %11 = vsyncadd [#allocation3], 0
      %s12 = sshll.u32 %s0, 4
      %s13 = int_to_ptr.hbm [resolvable:$true] %s12
      %s14 = sshll.u32 [#allocation2], 4
      %s15 = int_to_ptr.vmem [resolvable:$true] %s14
      %20 = dma.hbm_to_vmem [thread:$0]  %s13, 256, %s15, [#allocation3], 128, 128, 8
    $region5: #{tpu_custom_call.1} parent=1 // pred_fallthru
      _
    // Predicated region
    $region6: #{tpu_custom_call.1} parent=1 // pred_check
      _
    $region7: #{tpu_custom_call.1} parent=1 // pred_check_branch
      %22 = sbr.rel (0) target = $region9
    $region8: #{tpu_custom_call.1} parent=1 // pred_region
      %24 = dma.done [#allocation3], 256
    $region9: #{tpu_custom_call.1} parent=1 // pred_fallthru
      _
    %v25 = vld [vmem:[#allocation2] sm:$0xff]
    %v26 = vld [vmem:[#allocation2 + $0x8] sm:$0xff]
    %v27 = vmul.f32 %v25, 2.0
    %v28 = vmul.f32 %v26, 2.0
    %v29 = vmul.f32 %v27, %v25
    %v30 = vmul.f32 %v28, %v26
    %v31 = vsub.f32 %v29, 1.0
    %v32 = vsub.f32 %v30, 1.0
    %v33 = vmul.f32 %v27, %v31
    %v34 = vmul.f32 %v28, %v32
    %v35 = vsub.f32 %v33, %v25
    %v36 = vsub.f32 %v34, %v26
    %37 = vst [vmem:[#allocation5] sm:$0xff] %v35
    %38 = vst [vmem:[#allocation5 + $0x8] sm:$0xff] %v36
    // Predicated region
    $region10: #{tpu_custom_call.1} parent=1 // pred_check
      _
    $region11: #{tpu_custom_call.1} parent=1 // pred_check_branch
      %40 = sbr.rel (0) target = $region13
    $region12: #{tpu_custom_call.1} parent=1 // pred_region
      %42 = vsyncadd [#allocation4], 0
      %s43 = sshll.u32 [#allocation5], 4
      %s44 = int_to_ptr.vmem [resolvable:$true] %s43
      %s45 = sshll.u32 %s1, 4
      %s46 = int_to_ptr.hbm [resolvable:$true] %s45
      %51 = dma.vmem_to_hbm [thread:$0]  %s44, 256, %s46, [#allocation4], 128, 128, 8
    $region13: #{tpu_custom_call.1} parent=1 // pred_fallthru
      _
    // Predicated region
    $region14: #{tpu_custom_call.1} parent=1 // pred_check
      _
    $region15: #{tpu_custom_call.1} parent=1 // pred_check_branch
      %53 = sbr.rel (0) target = $region17
    $region16: #{tpu_custom_call.1} parent=1 // pred_region
      %55 = dma.done [#allocation4], 256
    $region17: #{tpu_custom_call.1} parent=1 // pred_fallthru
      _
    %56 = vsyncpa [#allocation3], 1
    %57 = vsyncpa [#allocation4], 1

</llo_original>
